<compile_context>
chip_gen: v7x
topology: tpu7x:2x2x1
jax: 0.10.0
libtpu: 0.0.40
codegen_flags: <defaults>
</compile_context>

<pallas_src>
import functools

import jax
import jax.numpy as jnp
import numpy as np
from jax import lax
from jax.experimental import pallas as pl
from jax.experimental.pallas import tpu as pltpu

PAD = 128           # lane-dense output padding (real output is 1 column)
NEG_SLOPE = 0.01    # torch.nn.LeakyReLU default negative_slope


# ---------------------------------------------------------------------------
# Kernel: one affine map + LeakyReLU per batch tile.
#   x_ref: [BT, D]   w_ref: [D, PAD]   b_ref: [1, PAD]   o_ref: [BT, PAD]
# ---------------------------------------------------------------------------
def _affine_kernel(x_ref, w_ref, b_ref, o_ref):
    y = jnp.dot(x_ref[...], w_ref[...], preferred_element_type=jnp.float32)
    y = y + b_ref[...]
    # Final LeakyReLU; padded lanes are exactly 0 -> stay 0.
    o_ref[...] = jnp.where(y >= 0.0, y, NEG_SLOPE * y).astype(o_ref.dtype)


def _round_up(n, m):
    return (n + m - 1) // m * m


@functools.partial(jax.jit, static_argnames=("b_tile",))
def baseball_forward(x, w_eff, b_eff, *, b_tile=512):
    """x: [B, input_dim] f32 -> [B, 1] f32 (eval-mode forward)."""
    B, D = x.shape
    bt = min(b_tile, _round_up(B, 8))          # full-sublane batch tile
    b_padded = _round_up(B, bt)
    if b_padded != B:
        x = jnp.pad(x, ((0, b_padded - B), (0, 0)))
    y_pad = pl.pallas_call(
        _affine_kernel,
        out_shape=jax.ShapeDtypeStruct((b_padded, PAD), jnp.float32),
        grid=(b_padded // bt,),
        in_specs=[
            pl.BlockSpec((bt, D), lambda i: (i, 0)),     # x tile (unpadded D)
            pl.BlockSpec((D, PAD), lambda i: (0, 0)),    # W_eff, resident
            pl.BlockSpec((1, PAD), lambda i: (0, 0)),    # b_eff, resident
        ],
        out_specs=pl.BlockSpec((bt, PAD), lambda i: (i, 0)),
        compiler_params=pltpu.CompilerParams(
            dimension_semantics=("parallel",)),
    )(x, w_eff, b_eff)
    # Lanes 1..PAD-1 of W_eff/b_eff are exactly zero, so this slice is exact.
    return y_pad[:B, :1]


# ---------------------------------------------------------------------------
# Deterministic parameter initialization (mirrors the PyTorch __init__ shapes).
# Weights stored transposed w.r.t. PyTorch: W is [in_features, out_features].
# ---------------------------------------------------------------------------
def init_params(key, input_dim):
    sizes = [input_dim, 4 * input_dim, 8 * input_dim, 4 * input_dim,
             4 * input_dim, 2 * input_dim, 2 * input_dim, input_dim]

    def linear_init(key, fan_in, fan_out):
        k1, k2 = jax.random.split(key)
        bound = 1.0 / jnp.sqrt(jnp.float32(fan_in))
        w = jax.random.uniform(k1, (fan_in, fan_out), jnp.float32, -bound, bound)
        b = jax.random.uniform(k2, (fan_out,), jnp.float32, -bound, bound)
        return w, b

    blocks = []
    prev = input_dim
    for h in sizes:
        linears = []
        for fan_in, fan_out in ((prev, h), (h, h), (h, h)):
            key, sub = jax.random.split(key)
            linears.append(linear_init(sub, fan_in, fan_out))
        # BatchNorm1d default buffers/params (eval mode uses running stats).
        bn = dict(gamma=jnp.ones((h,), jnp.float32),
                  beta=jnp.zeros((h,), jnp.float32),
                  mean=jnp.zeros((h,), jnp.float32),
                  var=jnp.ones((h,), jnp.float32),
                  eps=1e-5)
        blocks.append((linears, bn))
        prev = h

    key, sub = jax.random.split(key)
    out_lin = linear_init(sub, input_dim, 1)
    return blocks, out_lin


# ---------------------------------------------------------------------------
# Pre-compose the ENTIRE eval-mode network into one affine map on the host,
# in float64, then pad to a lane-dense [D, PAD] / [1, PAD] slab.
# ---------------------------------------------------------------------------
def prepare_affine_params(blocks, out_lin, pad=PAD):
    d = int(np.asarray(blocks[0][0][0][0]).shape[0])      # input_dim
    W = np.eye(d, dtype=np.float64)
    b = np.zeros((d,), dtype=np.float64)
    for linears, bn in blocks:
        for w, bias in linears:
            w64 = np.asarray(w, dtype=np.float64)
            W = W @ w64
            b = b @ w64 + np.asarray(bias, dtype=np.float64)
        # Eval-mode BatchNorm1d: y = x*scale + shift.
        scale = np.asarray(bn["gamma"], np.float64) / np.sqrt(
            np.asarray(bn["var"], np.float64) + bn["eps"])
        shift = np.asarray(bn["beta"], np.float64) - np.asarray(bn["mean"], np.float64) * scale
        W = W * scale[None, :]
        b = b * scale + shift
        # Dropout: identity at eval time.
    w_out, b_out = out_lin
    w64 = np.asarray(w_out, dtype=np.float64)
    W = W @ w64                                            # [D, 1]
    b = b @ w64 + np.asarray(b_out, dtype=np.float64)      # [1]
    # Pad; lanes 1..PAD-1 stay exactly 0 so LeakyReLU keeps them 0 and the
    # final [:, :1] slice is exact.
    W_pad = np.zeros((d, pad), np.float32)
    W_pad[:, :W.shape[1]] = W.astype(np.float32)
    b_pad = np.zeros((1, pad), np.float32)
    b_pad[0, :b.shape[0]] = b.astype(np.float32)
    return jnp.asarray(W_pad), jnp.asarray(b_pad)


# ---------------------------------------------------------------------------
# Pure-JAX reference (unpadded, unfused, sequential) for a correctness check.
# ---------------------------------------------------------------------------
def _ref_forward(x, blocks, out_lin):
    h = x
    for linears, bn in blocks:
        for w, b in linears:
            h = jnp.dot(h, w, precision=lax.Precision.HIGHEST) + b
        scale = bn["gamma"] / jnp.sqrt(bn["var"] + bn["eps"])
        shift = bn["beta"] - bn["mean"] * scale
        h = h * scale + shift
    w, b = out_lin
    h = jnp.dot(h, w, precision=lax.Precision.HIGHEST) + b
    return jnp.where(h >= 0.0, h, NEG_SLOPE * h)


if __name__ == "__main__":
    key = jax.random.PRNGKey(0)
    INPUT_DIM = 8      # len(args.input_args) - 1
    BATCH = 4

    key, pkey, xkey = jax.random.split(key, 3)
    blocks, out_lin = init_params(pkey, INPUT_DIM)
    w_eff, b_eff = prepare_affine_params(blocks, out_lin)
    x = jax.random.normal(xkey, (BATCH, INPUT_DIM), jnp.float32)

    y = baseball_forward(x, w_eff, b_eff)
    jax.block_until_ready(y)
    assert y.shape == (BATCH, 1) and y.dtype == jnp.float32

    y_ref = _ref_forward(x, blocks, out_lin)
    assert jnp.allclose(y, y_ref, rtol=1e-2, atol=1e-3), (y, y_ref)

    print("KERNEL_OK")
</pallas_src>

<mosaic_0001>
module attributes {stable_mosaic.version = 11 : i64} {
  func.func @_affine_kernel(%arg0: i32, %arg1: memref<8x8xf32, #tpu.memory_space<vmem>>, %arg2: memref<8x128xf32, #tpu.memory_space<vmem>>, %arg3: memref<1x128xf32, #tpu.memory_space<vmem>>, %arg4: memref<8x128xf32, #tpu.memory_space<vmem>>) attributes {dimension_semantics = [#tpu.dimension_semantics<parallel>], iteration_bounds = array<i64: 1>, scalar_prefetch = 0 : i64, scratch_operands = 0 : i64, tpu.core_type = #tpu.core_type<tc>, window_params = [{transform_indices = @transform_0, window_bounds = array<i64: 8, 8>}, {pipeline_mode = #tpu.pipeline_mode<synchronous>, transform_indices = @transform_1, window_bounds = array<i64: 8, 128>}, {pipeline_mode = #tpu.pipeline_mode<synchronous>, transform_indices = @transform_2, window_bounds = array<i64: 1, 128>}, {transform_indices = @transform_3, window_bounds = array<i64: 8, 128>}]} {
    %c0 = arith.constant 0 : index
    %c0_0 = arith.constant 0 : index
    %0 = vector.load %arg1[%c0, %c0_0] : memref<8x8xf32, #tpu.memory_space<vmem>>, vector<8x8xf32>
    %c0_1 = arith.constant 0 : index
    %c0_2 = arith.constant 0 : index
    %1 = vector.load %arg2[%c0_1, %c0_2] : memref<8x128xf32, #tpu.memory_space<vmem>>, vector<8x128xf32>
    %cst = arith.constant dense<0.000000e+00> : vector<8x128xf32>
    %2 = tpu.matmul %0, %1, %cst {dimension_numbers = #tpu.dot_dimension_numbers<[1], [0], [0], [1], [0, 0, 1, 1], [], []>} : vector<8x8xf32>, vector<8x128xf32>, vector<8x128xf32> -> vector<8x128xf32>
    %c0_3 = arith.constant 0 : index
    %c0_4 = arith.constant 0 : index
    %3 = vector.load %arg3[%c0_3, %c0_4] : memref<1x128xf32, #tpu.memory_space<vmem>>, vector<1x128xf32>
    %4 = vector.broadcast %3 : vector<1x128xf32> to vector<8x128xf32>
    %5 = arith.addf %2, %4 : vector<8x128xf32>
    %cst_5 = arith.constant 0.000000e+00 : f32
    %6 = vector.broadcast %cst_5 : f32 to vector<8x128xf32>
    %7 = arith.cmpf oge, %5, %6 : vector<8x128xf32>
    %cst_6 = arith.constant 0.00999999977 : f32
    %8 = vector.broadcast %cst_6 : f32 to vector<8x128xf32>
    %9 = arith.mulf %8, %5 : vector<8x128xf32>
    %10 = arith.select %7, %5, %9 : vector<8x128xi1>, vector<8x128xf32>
    %c0_7 = arith.constant 0 : index
    %c0_8 = arith.constant 0 : index
    %11 = vector.load %arg4[%c0_7, %c0_8] : memref<8x128xf32, #tpu.memory_space<vmem>>, vector<8x128xf32>
    tpu.vector_store %arg4[%c0_7, %c0_8], %10 {strides = array<i32>} : memref<8x128xf32, #tpu.memory_space<vmem>>, vector<8x128xf32>,
    return
  }
  func.func @transform_0(%arg0: i32) -> (i32, i32) {
    %c0_i32 = arith.constant 0 : i32
    %c0_i32_0 = arith.constant 0 : i32
    return %arg0, %c0_i32 : i32, i32
  }
  func.func @transform_1(%arg0: i32) -> (i32, i32) {
    %c0_i32 = arith.constant 0 : i32
    %c0_i32_0 = arith.constant 0 : i32
    %c0_i32_1 = arith.constant 0 : i32
    return %c0_i32, %c0_i32_0 : i32, i32
  }
  func.func @transform_2(%arg0: i32) -> (i32, i32) {
    %c0_i32 = arith.constant 0 : i32
    %c0_i32_0 = arith.constant 0 : i32
    %c0_i32_1 = arith.constant 0 : i32
    return %c0_i32, %c0_i32_0 : i32, i32
  }
  func.func @transform_3(%arg0: i32) -> (i32, i32) {
    %c0_i32 = arith.constant 0 : i32
    %c0_i32_0 = arith.constant 0 : i32
    return %arg0, %c0_i32 : i32, i32
  }
}

</mosaic_0001>

<llo_original>
// kernel: baseball_forward.1
$region0: #{baseball_forward.1}
  #allocation0 [shape = 'u32[]', space=smem, size = 0x4, offset = 0x4, fixed_abs, tag = 'smem constant byte address 0x4 - core index']
  #allocation1 [shape = 'u32[144,128]{1,0:T(1,128)}', space=vmem, size = 0x12000, scoped, tag = 'internal scratch']
  %s0 = inlined_call_operand.vmem [shape: f32[8,8], index: 0, kind: input, shape index: {}]
  %s1 = inlined_call_operand.vmem [shape: f32[8,128], index: 1, kind: input, shape index: {}]
  %s2 = inlined_call_operand.vmem [shape: f32[1,128], index: 2, kind: input, shape index: {}]
  %s3 = inlined_call_operand.vmem [shape: f32[8,128], index: 3, kind: output, shape index: {}]
  %s4 = sld [smem:[#allocation0]]
  $region22: #{baseball_forward.1} parent=0
    _
  %s6 = ssub.s32 1, %s4
  %s7 = scalar_select 0, %s6, %s4
  // Predicated region
  $region2: #{baseball_forward.1} parent=0 // pred_check
    _
  $region3: #{baseball_forward.1} parent=0 // pred_check_branch
    %9 = sbr.rel (0) target = $region5
  $region4: #{baseball_forward.1} parent=0 // pred_region
    _
  $region5: #{baseball_forward.1} parent=0 // pred_fallthru
    _
  // Predicated region
  $region6: #{baseball_forward.1} parent=0 // pred_check
    _
  $region7: #{baseball_forward.1} parent=0 // pred_check_branch
    %11 = sbr.rel (0) target = $region9
  $region8: #{baseball_forward.1} parent=0 // pred_region
    _
  $region9: #{baseball_forward.1} parent=0 // pred_fallthru
    _
  // Predicated region
  $region10: #{baseball_forward.1} parent=0 // pred_check
    _
  $region11: #{baseball_forward.1} parent=0 // pred_check_branch
    %13 = sbr.rel (0) target = $region13
  $region12: #{baseball_forward.1} parent=0 // pred_region
    _
  $region13: #{baseball_forward.1} parent=0 // pred_fallthru
    _
  %v14 = vld [vmem:[%s0] sm:$0xff]
  %v15 = vld [vmem:[%s1] sm:$0xff]
  %v16 = vld [vmem:[%s2] sm:$0x1]
  %v18 = vlaneseq
  %v19 = vshrl.u32 %v18, 7
  %v20 = vsub.s32 0, %v19
  %v21 = vrot.slane %v16, %v20
  %vm23 = vcmask 64512
  %v25 = vsel %vm23, %v14, 0
  %27 = vmatprep.subr.mxu0 0.0
  %28 = vmatpush1.msra.mxu0 %v15
  %29 = vmatprep.subr.mxu0 0.0
  %30 = vmatpush1.msra.mxu0 0.0
  %31 = vmatprep.subr.mxu0 0.0
  %32 = vmatpush1.msra.mxu0 0.0
  %33 = vmatprep.subr.mxu0 0.0
  %34 = vmatpush1.msra.mxu0 0.0
  %35 = vmatprep.subr.mxu0 0.0
  %36 = vmatpush1.msra.mxu0 0.0
  %37 = vmatprep.subr.mxu0 0.0
  %38 = vmatpush1.msra.mxu0 0.0
  %39 = vmatprep.subr.mxu0 0.0
  %40 = vmatpush1.msra.mxu0 0.0
  %41 = vmatprep.subr.mxu0 0.0
  %42 = vmatpush1.msra.mxu0 0.0
  %43 = vmatprep.subr.mxu0 0.0
  %44 = vmatpush1.msra.mxu0 0.0
  %45 = vmatprep.subr.mxu0 0.0
  %46 = vmatpush1.msra.mxu0 0.0
  %47 = vmatprep.subr.mxu0 0.0
  %48 = vmatpush1.msra.mxu0 0.0
  %49 = vmatprep.subr.mxu0 0.0
  %50 = vmatpush1.msra.mxu0 0.0
  %51 = vmatprep.subr.mxu0 0.0
  %52 = vmatpush1.msra.mxu0 0.0
  %53 = vmatprep.subr.mxu0 0.0
  %54 = vmatpush1.msra.mxu0 0.0
  %55 = vmatprep.subr.mxu0 0.0
  %56 = vmatpush1.msra.mxu0 0.0
  %57 = vmatprep.subr.mxu0 0.0
  %58 = vmatpush1.msra.mxu0 0.0
  %59 = vmatprep.subr.mxu0 0.0
  %60 = vmatpush1.msra.mxu0 0.0
  %61 = vmatprep.subr.mxu0 0.0
  %62 = vmatpush1.msra.mxu0 0.0
  %63 = vmatprep.subr.mxu0 0.0
  %64 = vmatpush1.msra.mxu0 0.0
  %65 = vmatprep.subr.mxu0 0.0
  %66 = vmatpush1.msra.mxu0 0.0
  %67 = vmatprep.subr.mxu0 0.0
  %68 = vmatpush1.msra.mxu0 0.0
  %69 = vmatprep.subr.mxu0 0.0
  %70 = vmatpush1.msra.mxu0 0.0
  %71 = vmatprep.subr.mxu0 0.0
  %72 = vmatpush1.msra.mxu0 0.0
  %73 = vmatprep.subr.mxu0 0.0
  %74 = vmatpush1.msra.mxu0 0.0
  %75 = vmatprep.subr.mxu0 0.0
  %76 = vmatpush1.msra.mxu0 0.0
  %77 = vmatprep.subr.mxu0 0.0
  %78 = vmatpush1.msra.mxu0 0.0
  %79 = vmatprep.subr.mxu0 0.0
  %80 = vmatpush1.msra.mxu0 0.0
  %81 = vmatprep.subr.mxu0 0.0
  %82 = vmatpush1.msra.mxu0 0.0
  %83 = vmatprep.subr.mxu0 0.0
  %84 = vmatpush1.msra.mxu0 0.0
  %85 = vmatprep.subr.mxu0 0.0
  %86 = vmatpush1.msra.mxu0 0.0
  %87 = vmatprep.subr.mxu0 0.0
  %88 = vmatpush1.msra.mxu0 0.0
  %89 = vmatprep.subr.mxu0 0.0
  %90 = vmatpush1.msra.mxu0 0.0
  %91 = vmatprep.mubr.f32.mxu0 0.0
  %92 = vmatmul.mubr.f32.gmra.mrb[0].mxu0 %v25
  %v93 = vpop.f32.mrb[0].mxu0
  %v94 = vadd.f32 %v21, %v93
  %v95 = vpop.f32.mrb[0].mxu0
  %96 = vdwg.mxu0
  %vm97 = vcmp.ge.f32.partialorder %v94, 0.0
  %v98 = vmul.f32 %v94, 0.01
  %v99 = vsel %vm97, %v94, %v98
  %100 = vst [vmem:[%s3] sm:$0xff] %v99
  // Predicated region
  $region14: #{baseball_forward.1} parent=0 // pred_check
    _
  $region15: #{baseball_forward.1} parent=0 // pred_check_branch
    %102 = sbr.rel (0) target = $region17
  $region16: #{baseball_forward.1} parent=0 // pred_region
    _
  $region17: #{baseball_forward.1} parent=0 // pred_fallthru
    _
  // Predicated region
  $region18: #{baseball_forward.1} parent=0 // pred_check
    _
  $region19: #{baseball_forward.1} parent=0 // pred_check_branch
    %104 = sbr.rel (0) target = $region21
  $region20: #{baseball_forward.1} parent=0 // pred_region
    _
  $region21: #{baseball_forward.1} parent=0 // pred_fallthru
    _

</llo_original>
